<compile_context>
chip_gen: v7x
topology: tpu7x:2x2x1
jax: 0.10.0
libtpu: 0.0.40
codegen_flags: <defaults>
</compile_context>

<pallas_src>
import jax
import jax.numpy as jnp
import numpy as np
from jax.experimental import pallas as pl
from jax.experimental.pallas import tpu as pltpu


def generator_kernel(x_ref, w1_ref, b1_ref, w2_ref, b2_ref, w3_ref, b3_ref,
                     out_ref):
    x = x_ref[...]                                                   # (bn, Din)
    h1 = jnp.dot(x, w1_ref[...], preferred_element_type=jnp.float32) + b1_ref[...]
    h1 = jnp.maximum(h1, 0.0)                                        # (bn, 128)
    h2 = jnp.dot(h1, w2_ref[...], preferred_element_type=jnp.float32) + b2_ref[...]
    h2 = jnp.maximum(h2, 0.0)                                        # (bn, 256)
    out_ref[...] = (jnp.dot(h2, w3_ref[...],
                            preferred_element_type=jnp.float32) + b3_ref[...])


def generator_forward(x, params, *, eps=1e-5, block_n_cap=512):
    """Pallas implementation of generator.forward (eval-mode BatchNorm)."""
    p = params
    N, Din = x.shape
    H1 = p["W1"].shape[1]
    H2 = p["W2"].shape[1]
    O = p["W3"].shape[1]

    # ---- hoist all grid-invariant work to the wrapper (done once) ----------
    s1 = p["g1"] / jnp.sqrt(p["v1"] + eps)                           # (H1,)
    w1f = (p["W1"] * s1[None, :]).astype(jnp.float32)                # (Din, H1)
    b1f = ((p["b1"] - p["m1"]) * s1 + p["be1"]).reshape(1, H1).astype(jnp.float32)

    s2 = p["g2"] / jnp.sqrt(p["v2"] + eps)                           # (H2,)
    w2f = (p["W2"] * s2[None, :]).astype(jnp.float32)                # (H1, H2)
    b2f = ((p["b2"] - p["m2"]) * s2 + p["be2"]).reshape(1, H2).astype(jnp.float32)

    # ---- pad the output dim to a full lane width (128) ---------------------
    O_pad = ((O + 127) // 128) * 128
    w3p = jnp.zeros((H2, O_pad), jnp.float32).at[:, :O].set(p["W3"])
    b3p = jnp.zeros((1, O_pad), jnp.float32).at[0, :O].set(p["b3"])

    # ---- grid: one fat step for small N, 512-row blocks at scale -----------
    block_n = N if N <= block_n_cap else block_n_cap
    grid = (pl.cdiv(N, block_n),)

    out = pl.pallas_call(
        generator_kernel,
        out_shape=jax.ShapeDtypeStruct((N, O_pad), jnp.float32),
        grid_spec=pltpu.PrefetchScalarGridSpec(
            num_scalar_prefetch=0,
            grid=grid,
            in_specs=[
                pl.BlockSpec((block_n, Din), lambda i: (i, 0)),   # x tile
                pl.BlockSpec((Din, H1), lambda i: (0, 0)),        # W1 (BN1 folded)
                pl.BlockSpec((1, H1), lambda i: (0, 0)),          # b1
                pl.BlockSpec((H1, H2), lambda i: (0, 0)),         # W2 (BN2 folded)
                pl.BlockSpec((1, H2), lambda i: (0, 0)),          # b2
                pl.BlockSpec((H2, O_pad), lambda i: (0, 0)),      # W3 (lane-padded)
                pl.BlockSpec((1, O_pad), lambda i: (0, 0)),       # b3
            ],
            out_specs=pl.BlockSpec((block_n, O_pad), lambda i: (i, 0)),
        ),
        compiler_params=pltpu.CompilerParams(
            dimension_semantics=("parallel",)),
    )(x.astype(jnp.float32), w1f, b1f, w2f, b2f, w3p, b3p)

    return out[:, :O]


def generator_reference(x, p, *, eps=1e-5):
    """Pure-JAX reference: Linear -> BN(eval) -> ReLU -> ... -> Linear."""
    h = x @ p["W1"] + p["b1"]
    h = (h - p["m1"]) / jnp.sqrt(p["v1"] + eps) * p["g1"] + p["be1"]
    h = jnp.maximum(h, 0.0)
    h = h @ p["W2"] + p["b2"]
    h = (h - p["m2"]) / jnp.sqrt(p["v2"] + eps) * p["g2"] + p["be2"]
    h = jnp.maximum(h, 0.0)
    return h @ p["W3"] + p["b3"]


if __name__ == "__main__":
    # Small shapes consistent with the module: z_dim=30, hidden 128/256,
    # output_dim=1, batch N=16.
    N, Z_DIM, H1, H2, O = 16, 30, 128, 256, 1

    key = jax.random.PRNGKey(0)
    ks = jax.random.split(key, 12)

    params = {
        # Linear layers (weights stored (in, out) for JAX-style x @ W).
        "W1": 0.02 * jax.random.normal(ks[0], (Z_DIM, H1), jnp.float32),
        "b1": 0.02 * jax.random.normal(ks[1], (H1,), jnp.float32),
        "W2": 0.02 * jax.random.normal(ks[2], (H1, H2), jnp.float32),
        "b2": 0.02 * jax.random.normal(ks[3], (H2,), jnp.float32),
        "W3": 0.02 * jax.random.normal(ks[4], (H2, O), jnp.float32),
        "b3": 0.02 * jax.random.normal(ks[5], (O,), jnp.float32),
        # BatchNorm1d(128): gamma, beta, running_mean, running_var.
        "g1": 1.0 + 0.02 * jax.random.normal(ks[6], (H1,), jnp.float32),
        "be1": 0.02 * jax.random.normal(ks[7], (H1,), jnp.float32),
        "m1": 0.05 * jax.random.normal(ks[8], (H1,), jnp.float32),
        "v1": 0.5 + jax.random.uniform(ks[9], (H1,), jnp.float32),
        # BatchNorm1d(256)
        "g2": 1.0 + 0.02 * jax.random.normal(ks[10], (H2,), jnp.float32),
        "be2": 0.02 * jax.random.normal(ks[11], (H2,), jnp.float32),
        "m2": 0.05 * jax.random.normal(ks[8], (H2,), jnp.float32),
        "v2": 0.5 + jax.random.uniform(ks[9], (H2,), jnp.float32),
    }

    x = jax.random.normal(jax.random.PRNGKey(42), (N, Z_DIM), jnp.float32)

    y = generator_forward(x, params)
    y = jax.block_until_ready(y)

    ref = generator_reference(x, params)
    np.testing.assert_allclose(np.asarray(y), np.asarray(ref),
                               rtol=1e-4, atol=1e-5)

    assert y.shape == (N, O)
    print("KERNEL_OK")
</pallas_src>

<mosaic_0001>
module attributes {stable_mosaic.version = 11 : i64} {
  func.func @generator_kernel(%arg0: i32, %arg1: memref<16x30xf32, #tpu.memory_space<vmem>>, %arg2: memref<30x128xf32, #tpu.memory_space<vmem>>, %arg3: memref<1x128xf32, #tpu.memory_space<vmem>>, %arg4: memref<128x256xf32, #tpu.memory_space<vmem>>, %arg5: memref<1x256xf32, #tpu.memory_space<vmem>>, %arg6: memref<256x128xf32, #tpu.memory_space<vmem>>, %arg7: memref<1x128xf32, #tpu.memory_space<vmem>>, %arg8: memref<16x128xf32, #tpu.memory_space<vmem>>) attributes {dimension_semantics = [#tpu.dimension_semantics<parallel>], iteration_bounds = array<i64: 1>, scalar_prefetch = 0 : i64, scratch_operands = 0 : i64, tpu.core_type = #tpu.core_type<tc>, window_params = [{transform_indices = @transform_0, window_bounds = array<i64: 16, 30>}, {pipeline_mode = #tpu.pipeline_mode<synchronous>, transform_indices = @transform_1, window_bounds = array<i64: 30, 128>}, {pipeline_mode = #tpu.pipeline_mode<synchronous>, transform_indices = @transform_2, window_bounds = array<i64: 1, 128>}, {pipeline_mode = #tpu.pipeline_mode<synchronous>, transform_indices = @transform_3, window_bounds = array<i64: 128, 256>}, {pipeline_mode = #tpu.pipeline_mode<synchronous>, transform_indices = @transform_4, window_bounds = array<i64: 1, 256>}, {pipeline_mode = #tpu.pipeline_mode<synchronous>, transform_indices = @transform_5, window_bounds = array<i64: 256, 128>}, {pipeline_mode = #tpu.pipeline_mode<synchronous>, transform_indices = @transform_6, window_bounds = array<i64: 1, 128>}, {transform_indices = @transform_7, window_bounds = array<i64: 16, 128>}]} {
    %c0 = arith.constant 0 : index
    %c0_0 = arith.constant 0 : index
    %0 = vector.load %arg1[%c0, %c0_0] : memref<16x30xf32, #tpu.memory_space<vmem>>, vector<16x30xf32>
    %c0_1 = arith.constant 0 : index
    %c0_2 = arith.constant 0 : index
    %1 = vector.load %arg2[%c0_1, %c0_2] : memref<30x128xf32, #tpu.memory_space<vmem>>, vector<30x128xf32>
    %cst = arith.constant dense<0.000000e+00> : vector<16x128xf32>
    %2 = tpu.matmul %0, %1, %cst {dimension_numbers = #tpu.dot_dimension_numbers<[1], [0], [0], [1], [0, 0, 1, 1], [], []>} : vector<16x30xf32>, vector<30x128xf32>, vector<16x128xf32> -> vector<16x128xf32>
    %c0_3 = arith.constant 0 : index
    %c0_4 = arith.constant 0 : index
    %3 = vector.load %arg3[%c0_3, %c0_4] : memref<1x128xf32, #tpu.memory_space<vmem>>, vector<1x128xf32>
    %4 = vector.broadcast %3 : vector<1x128xf32> to vector<16x128xf32>
    %5 = arith.addf %2, %4 : vector<16x128xf32>
    %cst_5 = arith.constant 0.000000e+00 : f32
    %6 = vector.broadcast %cst_5 : f32 to vector<16x128xf32>
    %7 = arith.maximumf %5, %6 : vector<16x128xf32>
    %c0_6 = arith.constant 0 : index
    %c0_7 = arith.constant 0 : index
    %8 = vector.load %arg4[%c0_6, %c0_7] : memref<128x256xf32, #tpu.memory_space<vmem>>, vector<128x256xf32>
    %cst_8 = arith.constant dense<0.000000e+00> : vector<16x256xf32>
    %9 = tpu.matmul %7, %8, %cst_8 {dimension_numbers = #tpu.dot_dimension_numbers<[1], [0], [0], [1], [0, 0, 1, 1], [], []>} : vector<16x128xf32>, vector<128x256xf32>, vector<16x256xf32> -> vector<16x256xf32>
    %c0_9 = arith.constant 0 : index
    %c0_10 = arith.constant 0 : index
    %10 = vector.load %arg5[%c0_9, %c0_10] : memref<1x256xf32, #tpu.memory_space<vmem>>, vector<1x256xf32>
    %11 = vector.broadcast %10 : vector<1x256xf32> to vector<16x256xf32>
    %12 = arith.addf %9, %11 : vector<16x256xf32>
    %cst_11 = arith.constant 0.000000e+00 : f32
    %13 = vector.broadcast %cst_11 : f32 to vector<16x256xf32>
    %14 = arith.maximumf %12, %13 : vector<16x256xf32>
    %c0_12 = arith.constant 0 : index
    %c0_13 = arith.constant 0 : index
    %15 = vector.load %arg6[%c0_12, %c0_13] : memref<256x128xf32, #tpu.memory_space<vmem>>, vector<256x128xf32>
    %cst_14 = arith.constant dense<0.000000e+00> : vector<16x128xf32>
    %16 = tpu.matmul %14, %15, %cst_14 {dimension_numbers = #tpu.dot_dimension_numbers<[1], [0], [0], [1], [0, 0, 1, 1], [], []>} : vector<16x256xf32>, vector<256x128xf32>, vector<16x128xf32> -> vector<16x128xf32>
    %c0_15 = arith.constant 0 : index
    %c0_16 = arith.constant 0 : index
    %17 = vector.load %arg7[%c0_15, %c0_16] : memref<1x128xf32, #tpu.memory_space<vmem>>, vector<1x128xf32>
    %18 = vector.broadcast %17 : vector<1x128xf32> to vector<16x128xf32>
    %19 = arith.addf %16, %18 : vector<16x128xf32>
    %c0_17 = arith.constant 0 : index
    %c0_18 = arith.constant 0 : index
    %20 = vector.load %arg8[%c0_17, %c0_18] : memref<16x128xf32, #tpu.memory_space<vmem>>, vector<16x128xf32>
    tpu.vector_store %arg8[%c0_17, %c0_18], %19 {strides = array<i32>} : memref<16x128xf32, #tpu.memory_space<vmem>>, vector<16x128xf32>,
    return
  }
  func.func @transform_0(%arg0: i32) -> (i32, i32) {
    %c0_i32 = arith.constant 0 : i32
    %c0_i32_0 = arith.constant 0 : i32
    return %arg0, %c0_i32 : i32, i32
  }
  func.func @transform_1(%arg0: i32) -> (i32, i32) {
    %c0_i32 = arith.constant 0 : i32
    %c0_i32_0 = arith.constant 0 : i32
    %c0_i32_1 = arith.constant 0 : i32
    return %c0_i32, %c0_i32_0 : i32, i32
  }
  func.func @transform_2(%arg0: i32) -> (i32, i32) {
    %c0_i32 = arith.constant 0 : i32
    %c0_i32_0 = arith.constant 0 : i32
    %c0_i32_1 = arith.constant 0 : i32
    return %c0_i32, %c0_i32_0 : i32, i32
  }
  func.func @transform_3(%arg0: i32) -> (i32, i32) {
    %c0_i32 = arith.constant 0 : i32
    %c0_i32_0 = arith.constant 0 : i32
    %c0_i32_1 = arith.constant 0 : i32
    return %c0_i32, %c0_i32_0 : i32, i32
  }
  func.func @transform_4(%arg0: i32) -> (i32, i32) {
    %c0_i32 = arith.constant 0 : i32
    %c0_i32_0 = arith.constant 0 : i32
    %c0_i32_1 = arith.constant 0 : i32
    return %c0_i32, %c0_i32_0 : i32, i32
  }
  func.func @transform_5(%arg0: i32) -> (i32, i32) {
    %c0_i32 = arith.constant 0 : i32
    %c0_i32_0 = arith.constant 0 : i32
    %c0_i32_1 = arith.constant 0 : i32
    return %c0_i32, %c0_i32_0 : i32, i32
  }
  func.func @transform_6(%arg0: i32) -> (i32, i32) {
    %c0_i32 = arith.constant 0 : i32
    %c0_i32_0 = arith.constant 0 : i32
    %c0_i32_1 = arith.constant 0 : i32
    return %c0_i32, %c0_i32_0 : i32, i32
  }
  func.func @transform_7(%arg0: i32) -> (i32, i32) {
    %c0_i32 = arith.constant 0 : i32
    %c0_i32_0 = arith.constant 0 : i32
    return %arg0, %c0_i32 : i32, i32
  }
}

</mosaic_0001>

<llo_original>
// kernel: tpu_custom_call.1
$region0: #{tpu_custom_call.1}
  #allocation0 [shape = 'u32[]', space=smem, size = 0x4, offset = 0x4, fixed_abs, tag = 'smem constant byte address 0x4 - core index']
  #allocation1 [shape = 'u32[144,128]{1,0:T(1,128)}', space=vmem, size = 0x12000, scoped, tag = 'internal scratch']
  %s0 = inlined_call_operand.hbm [shape: f32[16,30], index: 0, kind: input, shape index: {}]
  %s1 = inlined_call_operand.hbm [shape: f32[30,128], index: 1, kind: input, shape index: {}]
  %s2 = inlined_call_operand.vmem [shape: f32[1,128], index: 2, kind: input, shape index: {}]
  %s3 = inlined_call_operand.hbm [shape: f32[128,256], index: 3, kind: input, shape index: {}]
  %s4 = inlined_call_operand.vmem [shape: f32[1,256], index: 4, kind: input, shape index: {}]
  %s5 = inlined_call_operand.hbm [shape: f32[256,128], index: 5, kind: input, shape index: {}]
  %s6 = inlined_call_operand.vmem [shape: f32[1,128], index: 6, kind: input, shape index: {}]
  %s7 = inlined_call_operand.hbm [shape: f32[16,128], index: 7, kind: output, shape index: {}]
  %s8 = sld [smem:[#allocation0]]
  $region54: #{tpu_custom_call.1} parent=0
    _
  %s10 = ssub.s32 1, %s8
  %s11 = scalar_select 0, %s10, %s8
  $region1: #{tpu_custom_call.1} parent=0
    #allocation2 [shape = 'u8[8192]{0}', space=vmem, size = 0x2000, scoped, tag = 'input window, operand 0, single buffered']
    #allocation3 [shape = 's32[1]{0}', space=sflag, size = 0x4, scoped, tag = 'scoped memory for tpu_custom_call.1']
    #allocation4 [shape = 's32[1]{0}', space=sflag, size = 0x4, scoped, tag = 'scoped memory for tpu_custom_call.1']
    #allocation5 [shape = 'u8[16384]{0}', space=vmem, size = 0x4000, scoped, tag = 'input window, operand 1, single buffered']
    #allocation6 [shape = 's32[1]{0}', space=sflag, size = 0x4, scoped, tag = 'scoped memory for tpu_custom_call.1']
    #allocation7 [shape = 'u8[131072]{0}', space=vmem, size = 0x20000, scoped, tag = 'input window, operand 3, single buffered']
    #allocation8 [shape = 'u8[131072]{0}', space=vmem, size = 0x20000, scoped, tag = 'input window, operand 5, single buffered']
    #allocation9 [shape = 's32[1]{0}', space=sflag, size = 0x4, scoped, tag = 'scoped memory for tpu_custom_call.1']
    #allocation10 [shape = 'u8[8192]{0}', space=vmem, size = 0x2000, scoped, tag = 'output window, operand 0, single buffered']
    %12 = vsyncpa [#allocation3], 0
    %13 = vsyncpa [#allocation6], 0
    %14 = vsyncpa [#allocation9], 0
    %15 = vsyncpa [#allocation4], 0
    // Predicated region
    $region2: #{tpu_custom_call.1} parent=1 // pred_check
      _
    $region3: #{tpu_custom_call.1} parent=1 // pred_check_branch
      %17 = sbr.rel (0) target = $region5
    $region4: #{tpu_custom_call.1} parent=1 // pred_region
      %s19 = ssub.s32 256, 256
      %20 = vsyncadd [#allocation3], %s19
      %s21 = sshll.u32 [#allocation2], 4
      %s22 = int_to_ptr.vmem [resolvable:$true] %s21
      %27 = dma.hbm_to_vmem [thread:$0]  %s0, 256, %s22, [#allocation3], 128, 128, 8
    $region5: #{tpu_custom_call.1} parent=1 // pred_fallthru
      _
    // Predicated region
    $region6: #{tpu_custom_call.1} parent=1 // pred_check
      _
    $region7: #{tpu_custom_call.1} parent=1 // pred_check_branch
      %29 = sbr.rel (0) target = $region9
    $region8: #{tpu_custom_call.1} parent=1 // pred_region
      %s31 = ssub.s32 512, 512
      %32 = vsyncadd [#allocation6], %s31
      %s33 = sshll.u32 [#allocation5], 4
      %s34 = int_to_ptr.vmem [resolvable:$true] %s33
      %39 = dma.hbm_to_vmem [thread:$0]  %s1, 512, %s34, [#allocation6], 128, 128, 8
    $region9: #{tpu_custom_call.1} parent=1 // pred_fallthru
      _
    // Predicated region
    $region10: #{tpu_custom_call.1} parent=1 // pred_check
      _
    $region11: #{tpu_custom_call.1} parent=1 // pred_check_branch
      %41 = sbr.rel (0) target = $region13
    $region12: #{tpu_custom_call.1} parent=1 // pred_region
      _
    $region13: #{tpu_custom_call.1} parent=1 // pred_fallthru
      _
    // Predicated region
    $region14: #{tpu_custom_call.1} parent=1 // pred_check
      _
    $region15: #{tpu_custom_call.1} parent=1 // pred_check_branch
      %43 = sbr.rel (0) target = $region17
    $region16: #{tpu_custom_call.1} parent=1 // pred_region
      %s45 = ssub.s32 4096, 4096
      %46 = vsyncadd [#allocation6], %s45
      %s47 = sshll.u32 [#allocation7], 4
      %s48 = int_to_ptr.vmem [resolvable:$true] %s47
      %53 = dma.hbm_to_vmem [thread:$0]  %s3, 4096, %s48, [#allocation6], 256, 256, 16
    $region17: #{tpu_custom_call.1} parent=1 // pred_fallthru
      _
    // Predicated region
    $region18: #{tpu_custom_call.1} parent=1 // pred_check
      _
    $region19: #{tpu_custom_call.1} parent=1 // pred_check_branch
      %55 = sbr.rel (0) target = $region21
    $region20: #{tpu_custom_call.1} parent=1 // pred_region
      _
    $region21: #{tpu_custom_call.1} parent=1 // pred_fallthru
      _
    // Predicated region
    $region22: #{tpu_custom_call.1} parent=1 // pred_check
      _
    $region23: #{tpu_custom_call.1} parent=1 // pred_check_branch
      %57 = sbr.rel (0) target = $region25
    $region24: #{tpu_custom_call.1} parent=1 // pred_region
      %s59 = ssub.s32 4096, 4096
      %60 = vsyncadd [#allocation9], %s59
      %s61 = sshll.u32 [#allocation8], 4
      %s62 = int_to_ptr.vmem [resolvable:$true] %s61
      %67 = dma.hbm_to_vmem [thread:$0]  %s5, 4096, %s62, [#allocation9], 128, 128, 8
    $region25: #{tpu_custom_call.1} parent=1 // pred_fallthru
      _
    // Predicated region
    $region26: #{tpu_custom_call.1} parent=1 // pred_check
      _
    $region27: #{tpu_custom_call.1} parent=1 // pred_check_branch
      %69 = sbr.rel (0) target = $region29
    $region28: #{tpu_custom_call.1} parent=1 // pred_region
      _
    $region29: #{tpu_custom_call.1} parent=1 // pred_fallthru
      _
    // Predicated region
    $region30: #{tpu_custom_call.1} parent=1 // pred_check
      _
    $region31: #{tpu_custom_call.1} parent=1 // pred_check_branch
      %71 = sbr.rel (0) target = $region33
    $region32: #{tpu_custom_call.1} parent=1 // pred_region
      %72 = dma.done [#allocation3], 256
    $region33: #{tpu_custom_call.1} parent=1 // pred_fallthru
      _
    // Predicated region
    $region34: #{tpu_custom_call.1} parent=1 // pred_check
      _
    $region35: #{tpu_custom_call.1} parent=1 // pred_check_branch
      %74 = sbr.rel (0) target = $region37
    $region36: #{tpu_custom_call.1} parent=1 // pred_region
      %75 = dma.done [#allocation6], 512
    $region37: #{tpu_custom_call.1} parent=1 // pred_fallthru
      _
    // Predicated region
    $region38: #{tpu_custom_call.1} parent=1 // pred_check
      _
    $region39: #{tpu_custom_call.1} parent=1 // pred_check_branch
      %77 = sbr.rel (0) target = $region41
    $region40: #{tpu_custom_call.1} parent=1 // pred_region
      %78 = dma.done [#allocation6], 4096
    $region41: #{tpu_custom_call.1} parent=1 // pred_fallthru
      _
    // Predicated region
    $region42: #{tpu_custom_call.1} parent=1 // pred_check
      _
    $region43: #{tpu_custom_call.1} parent=1 // pred_check_branch
      %80 = sbr.rel (0) target = $region45
    $region44: #{tpu_custom_call.1} parent=1 // pred_region
      %81 = dma.done [#allocation9], 4096
    $region45: #{tpu_custom_call.1} parent=1 // pred_fallthru
      _
    %v82 = vld [vmem:[#allocation2] sm:$0xff]
    %v83 = vld [vmem:[#allocation2 + $0x8] sm:$0xff]
    %v84 = vld [vmem:[#allocation5] sm:$0xff]
    %v85 = vld [vmem:[#allocation5 + $0x8] sm:$0xff]
    %v86 = vld [vmem:[#allocation5 + $0x10] sm:$0xff]
    %v87 = vld [vmem:[#allocation5 + $0x18] sm:$0x3f]
    %v88 = vld [vmem:[%s2] sm:$0x1]
    %v90 = vlaneseq
    %v91 = vshrl.u32 %v90, 7
    %v92 = vsub.s32 0, %v91
    %v93 = vrot.slane %v88, %v92
    %vm95 = vcmask 244736
    %v97 = vsel %vm95, %v82, 0
    %v100 = vsel %vm95, %v83, 0
    %vm102 = vcmask 1045504
    %v104 = vsel %vm102, %v87, 0
    %106 = vmatprep.subr.mxu0 0.0
    %107 = vmatpush1.msra.mxu0 %v84
    %108 = vmatprep.subr.mxu0 0.0
    %109 = vmatpush1.msra.mxu0 %v85
    %110 = vmatprep.subr.mxu0 0.0
    %111 = vmatpush1.msra.mxu0 %v86
    %112 = vmatprep.subr.mxu0 0.0
    %113 = vmatpush1.msra.mxu0 %v104
    %114 = vmatprep.subr.mxu0 0.0
    %115 = vmatpush1.msra.mxu0 0.0
    %116 = vmatprep.subr.mxu0 0.0
    %117 = vmatpush1.msra.mxu0 0.0
    %118 = vmatprep.subr.mxu0 0.0
    %119 = vmatpush1.msra.mxu0 0.0
    %120 = vmatprep.subr.mxu0 0.0
    %121 = vmatpush1.msra.mxu0 0.0
    %122 = vmatprep.subr.mxu0 0.0
    %123 = vmatpush1.msra.mxu0 0.0
    %124 = vmatprep.subr.mxu0 0.0
    %125 = vmatpush1.msra.mxu0 0.0
    %126 = vmatprep.subr.mxu0 0.0
    %127 = vmatpush1.msra.mxu0 0.0
    %128 = vmatprep.subr.mxu0 0.0
    %129 = vmatpush1.msra.mxu0 0.0
    %130 = vmatprep.subr.mxu0 0.0
    %131 = vmatpush1.msra.mxu0 0.0
    %132 = vmatprep.subr.mxu0 0.0
    %133 = vmatpush1.msra.mxu0 0.0
    %134 = vmatprep.subr.mxu0 0.0
    %135 = vmatpush1.msra.mxu0 0.0
    %136 = vmatprep.subr.mxu0 0.0
    %137 = vmatpush1.msra.mxu0 0.0
    %138 = vmatprep.subr.mxu0 0.0
    %139 = vmatpush1.msra.mxu0 0.0
    %140 = vmatprep.subr.mxu0 0.0
    %141 = vmatpush1.msra.mxu0 0.0
    %142 = vmatprep.subr.mxu0 0.0
    %143 = vmatpush1.msra.mxu0 0.0
    %144 = vmatprep.subr.mxu0 0.0
    %145 = vmatpush1.msra.mxu0 0.0
    %146 = vmatprep.subr.mxu0 0.0
    %147 = vmatpush1.msra.mxu0 0.0
    %148 = vmatprep.subr.mxu0 0.0
    %149 = vmatpush1.msra.mxu0 0.0
    %150 = vmatprep.subr.mxu0 0.0
    %151 = vmatpush1.msra.mxu0 0.0
    %152 = vmatprep.subr.mxu0 0.0
    %153 = vmatpush1.msra.mxu0 0.0
    %154 = vmatprep.subr.mxu0 0.0
    %155 = vmatpush1.msra.mxu0 0.0
    %156 = vmatprep.subr.mxu0 0.0
    %157 = vmatpush1.msra.mxu0 0.0
    %158 = vmatprep.subr.mxu0 0.0
    %159 = vmatpush1.msra.mxu0 0.0
    %160 = vmatprep.subr.mxu0 0.0
    %161 = vmatpush1.msra.mxu0 0.0
    %162 = vmatprep.subr.mxu0 0.0
    %163 = vmatpush1.msra.mxu0 0.0
    %164 = vmatprep.subr.mxu0 0.0
    %165 = vmatpush1.msra.mxu0 0.0
    %166 = vmatprep.subr.mxu0 0.0
    %167 = vmatpush1.msra.mxu0 0.0
    %168 = vmatprep.subr.mxu0 0.0
    %169 = vmatpush1.msra.mxu0 0.0
    %170 = vmatprep.mubr.f32.mxu0 0.0
    %171 = vmatmul.mubr.f32.gmra.mrb[0].mxu0 %v97
    %v172 = vpop.f32.mrb[0].mxu0
    %v173 = vadd.f32 %v93, %v172
    %v174 = vpop.f32.mrb[0].mxu0
    %175 = vmatprep.mubr.f32.mxu0 0.0
    %176 = vmatmul.mubr.f32.gmra.mrb[0].mxu0 %v100
    %v177 = vpop.f32.mrb[0].mxu0
    %v178 = vadd.f32 %v93, %v177
    %v179 = vpop.f32.mrb[0].mxu0
    %180 = vdwg.mxu0
    %v181 = vmax.f32 %v173, 0.0
    %v182 = vmax.f32 %v178, 0.0
    %v183 = vld [vmem:[#allocation7] sm:$0xff]
    %v184 = vld [vmem:[#allocation7 + $0x8] sm:$0xff]
    %v185 = vld [vmem:[#allocation7 + $0x10] sm:$0xff]
    %v186 = vld [vmem:[#allocation7 + $0x18] sm:$0xff]
    %v187 = vld [vmem:[#allocation7 + $0x20] sm:$0xff]
    %v188 = vld [vmem:[#allocation7 + $0x28] sm:$0xff]
    %v189 = vld [vmem:[#allocation7 + $0x30] sm:$0xff]
    %v190 = vld [vmem:[#allocation7 + $0x38] sm:$0xff]
    %v191 = vld [vmem:[#allocation7 + $0x40] sm:$0xff]
    %v192 = vld [vmem:[#allocation7 + $0x48] sm:$0xff]
    %v193 = vld [vmem:[#allocation7 + $0x50] sm:$0xff]
    %v194 = vld [vmem:[#allocation7 + $0x58] sm:$0xff]
    %v195 = vld [vmem:[#allocation7 + $0x60] sm:$0xff]
    %v196 = vld [vmem:[#allocation7 + $0x68] sm:$0xff]
    %v197 = vld [vmem:[#allocation7 + $0x70] sm:$0xff]
    %v198 = vld [vmem:[#allocation7 + $0x78] sm:$0xff]
    %v199 = vld [vmem:[#allocation7 + $0x80] sm:$0xff]
    %v200 = vld [vmem:[#allocation7 + $0x88] sm:$0xff]
    %v201 = vld [vmem:[#allocation7 + $0x90] sm:$0xff]
    %v202 = vld [vmem:[#allocation7 + $0x98] sm:$0xff]
    %v203 = vld [vmem:[#allocation7 + $0xa0] sm:$0xff]
    %v204 = vld [vmem:[#allocation7 + $0xa8] sm:$0xff]
    %v205 = vld [vmem:[#allocation7 + $0xb0] sm:$0xff]
    %v206 = vld [vmem:[#allocation7 + $0xb8] sm:$0xff]
    %v207 = vld [vmem:[#allocation7 + $0xc0] sm:$0xff]
    %v208 = vld [vmem:[#allocation7 + $0xc8] sm:$0xff]
    %v209 = vld [vmem:[#allocation7 + $0xd0] sm:$0xff]
    %v210 = vld [vmem:[#allocation7 + $0xd8] sm:$0xff]
    %v211 = vld [vmem:[#allocation7 + $0xe0] sm:$0xff]
    %v212 = vld [vmem:[#allocation7 + $0xe8] sm:$0xff]
    %v213 = vld [vmem:[#allocation7 + $0xf0] sm:$0xff]
    %v214 = vld [vmem:[#allocation7 + $0xf8] sm:$0xff]
    %v215 = vld [vmem:[%s4] sm:$0x3]
    %v217 = vlaneseq
    %v218 = vshrl.u32 %v217, 7
    %v219 = vsub.s32 0, %v218
    %v220 = vrot.slane %v215, %v219
    %v221 = vlaneseq
    %v222 = vshrl.u32 %v221, 7
    %v223 = vsub.s32 1, %v222
    %v224 = vrot.slane %v215, %v223
    %227 = vmatprep.subr.mxu0 %v184
    %228 = vmatpush1.msra.mxu0 %v183
    %229 = vmatprep.subr.mxu0 %v186
    %230 = vmatpush1.msra.mxu0 %v185
    %231 = vmatprep.subr.mxu0 %v188
    %232 = vmatpush1.msra.mxu0 %v187
    %233 = vmatprep.subr.mxu0 %v190
    %234 = vmatpush1.msra.mxu0 %v189
    %235 = vmatprep.subr.mxu0 %v192
    %236 = vmatpush1.msra.mxu0 %v191
    %237 = vmatprep.subr.mxu0 %v194
    %238 = vmatpush1.msra.mxu0 %v193
    %239 = vmatprep.subr.mxu0 %v196
    %240 = vmatpush1.msra.mxu0 %v195
    %241 = vmatprep.subr.mxu0 %v198
    %242 = vmatpush1.msra.mxu0 %v197
    %243 = vmatprep.subr.mxu0 %v200
    %244 = vmatpush1.msra.mxu0 %v199
    %245 = vmatprep.subr.mxu0 %v202
    %246 = vmatpush1.msra.mxu0 %v201
    %247 = vmatprep.subr.mxu0 %v204
    %248 = vmatpush1.msra.mxu0 %v203
    %249 = vmatprep.subr.mxu0 %v206
    %250 = vmatpush1.msra.mxu0 %v205
    %251 = vmatprep.subr.mxu0 %v208
    %252 = vmatpush1.msra.mxu0 %v207
    %253 = vmatprep.subr.mxu0 %v210
    %254 = vmatpush1.msra.mxu0 %v209
    %255 = vmatprep.subr.mxu0 %v212
    %256 = vmatpush1.msra.mxu0 %v211
    %257 = vmatprep.subr.mxu0 %v214
    %258 = vmatpush1.msra.mxu0 %v213
    %259 = vmatprep.subr.mxu0 0.0
    %260 = vmatpush1.msra.mxu0 0.0
    %261 = vmatprep.subr.mxu0 0.0
    %262 = vmatpush1.msra.mxu0 0.0
    %263 = vmatprep.subr.mxu0 0.0
    %264 = vmatpush1.msra.mxu0 0.0
    %265 = vmatprep.subr.mxu0 0.0
    %266 = vmatpush1.msra.mxu0 0.0
    %267 = vmatprep.subr.mxu0 0.0
    %268 = vmatpush1.msra.mxu0 0.0
    %269 = vmatprep.subr.mxu0 0.0
    %270 = vmatpush1.msra.mxu0 0.0
    %271 = vmatprep.subr.mxu0 0.0
    %272 = vmatpush1.msra.mxu0 0.0
    %273 = vmatprep.subr.mxu0 0.0
    %274 = vmatpush1.msra.mxu0 0.0
    %275 = vmatprep.subr.mxu0 0.0
    %276 = vmatpush1.msra.mxu0 0.0
    %277 = vmatprep.subr.mxu0 0.0
    %278 = vmatpush1.msra.mxu0 0.0
    %279 = vmatprep.subr.mxu0 0.0
    %280 = vmatpush1.msra.mxu0 0.0
    %281 = vmatprep.subr.mxu0 0.0
    %282 = vmatpush1.msra.mxu0 0.0
    %283 = vmatprep.subr.mxu0 0.0
    %284 = vmatpush1.msra.mxu0 0.0
    %285 = vmatprep.subr.mxu0 0.0
    %286 = vmatpush1.msra.mxu0 0.0
    %287 = vmatprep.subr.mxu0 0.0
    %288 = vmatpush1.msra.mxu0 0.0
    %289 = vmatprep.subr.mxu0 0.0
    %290 = vmatpush1.msra.mxu0 0.0
    %291 = vmatprep.mubr.f32.mxu0 0.0
    %292 = vmatmul.mubr.f32.gmra.mrb[0].mxu0 %v181
    %v293 = vpop.f32.mrb[0].mxu0
    %v294 = vadd.f32 %v220, %v293
    %v295 = vpop.f32.mrb[0].mxu0
    %v296 = vadd.f32 %v224, %v295
    %297 = vmatprep.mubr.f32.mxu0 0.0
    %298 = vmatmul.mubr.f32.gmra.mrb[0].mxu0 %v182
    %v299 = vpop.f32.mrb[0].mxu0
    %v300 = vadd.f32 %v220, %v299
    %v301 = vpop.f32.mrb[0].mxu0
    %v302 = vadd.f32 %v224, %v301
    %303 = vdwg.mxu0
    %v304 = vmax.f32 %v294, 0.0
    %v305 = vmax.f32 %v296, 0.0
    %v306 = vmax.f32 %v300, 0.0
    %v307 = vmax.f32 %v302, 0.0
    %v308 = vld [vmem:[#allocation8] sm:$0xff]
    %v309 = vld [vmem:[#allocation8 + $0x8] sm:$0xff]
    %v310 = vld [vmem:[#allocation8 + $0x10] sm:$0xff]
    %v311 = vld [vmem:[#allocation8 + $0x18] sm:$0xff]
    %v312 = vld [vmem:[#allocation8 + $0x20] sm:$0xff]
    %v313 = vld [vmem:[#allocation8 + $0x28] sm:$0xff]
    %v314 = vld [vmem:[#allocation8 + $0x30] sm:$0xff]
    %v315 = vld [vmem:[#allocation8 + $0x38] sm:$0xff]
    %v316 = vld [vmem:[#allocation8 + $0x40] sm:$0xff]
    %v317 = vld [vmem:[#allocation8 + $0x48] sm:$0xff]
    %v318 = vld [vmem:[#allocation8 + $0x50] sm:$0xff]
    %v319 = vld [vmem:[#allocation8 + $0x58] sm:$0xff]
    %v320 = vld [vmem:[#allocation8 + $0x60] sm:$0xff]
    %v321 = vld [vmem:[#allocation8 + $0x68] sm:$0xff]
    %v322 = vld [vmem:[#allocation8 + $0x70] sm:$0xff]
    %v323 = vld [vmem:[#allocation8 + $0x78] sm:$0xff]
    %v324 = vld [vmem:[#allocation8 + $0x80] sm:$0xff]
    %v325 = vld [vmem:[#allocation8 + $0x88] sm:$0xff]
    %v326 = vld [vmem:[#allocation8 + $0x90] sm:$0xff]
    %v327 = vld [vmem:[#allocation8 + $0x98] sm:$0xff]
    %v328 = vld [vmem:[#allocation8 + $0xa0] sm:$0xff]
    %v329 = vld [vmem:[#allocation8 + $0xa8] sm:$0xff]
    %v330 = vld [vmem:[#allocation8 + $0xb0] sm:$0xff]
    %v331 = vld [vmem:[#allocation8 + $0xb8] sm:$0xff]
    %v332 = vld [vmem:[#allocation8 + $0xc0] sm:$0xff]
    %v333 = vld [vmem:[#allocation8 + $0xc8] sm:$0xff]
    %v334 = vld [vmem:[#allocation8 + $0xd0] sm:$0xff]
    %v335 = vld [vmem:[#allocation8 + $0xd8] sm:$0xff]
    %v336 = vld [vmem:[#allocation8 + $0xe0] sm:$0xff]
    %v337 = vld [vmem:[#allocation8 + $0xe8] sm:$0xff]
    %v338 = vld [vmem:[#allocation8 + $0xf0] sm:$0xff]
    %v339 = vld [vmem:[#allocation8 + $0xf8] sm:$0xff]
    %v340 = vld [vmem:[%s6] sm:$0x1]
    %v342 = vlaneseq
    %v343 = vshrl.u32 %v342, 7
    %v344 = vsub.s32 0, %v343
    %v345 = vrot.slane %v340, %v344
    %347 = vmatprep.subr.mxu0 0.0
    %348 = vmatpush1.msra.mxu0 %v308
    %349 = vmatprep.subr.mxu0 0.0
    %350 = vmatpush1.msra.mxu0 %v309
    %351 = vmatprep.subr.mxu0 0.0
    %352 = vmatpush1.msra.mxu0 %v310
    %353 = vmatprep.subr.mxu0 0.0
    %354 = vmatpush1.msra.mxu0 %v311
    %355 = vmatprep.subr.mxu0 0.0
    %356 = vmatpush1.msra.mxu0 %v312
    %357 = vmatprep.subr.mxu0 0.0
    %358 = vmatpush1.msra.mxu0 %v313
    %359 = vmatprep.subr.mxu0 0.0
    %360 = vmatpush1.msra.mxu0 %v314
    %361 = vmatprep.subr.mxu0 0.0
    %362 = vmatpush1.msra.mxu0 %v315
    %363 = vmatprep.subr.mxu0 0.0
    %364 = vmatpush1.msra.mxu0 %v316
    %365 = vmatprep.subr.mxu0 0.0
    %366 = vmatpush1.msra.mxu0 %v317
    %367 = vmatprep.subr.mxu0 0.0
    %368 = vmatpush1.msra.mxu0 %v318
    %369 = vmatprep.subr.mxu0 0.0
    %370 = vmatpush1.msra.mxu0 %v319
    %371 = vmatprep.subr.mxu0 0.0
    %372 = vmatpush1.msra.mxu0 %v320
    %373 = vmatprep.subr.mxu0 0.0
    %374 = vmatpush1.msra.mxu0 %v321
    %375 = vmatprep.subr.mxu0 0.0
    %376 = vmatpush1.msra.mxu0 %v322
    %377 = vmatprep.subr.mxu0 0.0
    %378 = vmatpush1.msra.mxu0 %v323
    %379 = vmatprep.subr.mxu0 0.0
    %380 = vmatpush1.msra.mxu0 %v324
    %381 = vmatprep.subr.mxu0 0.0
    %382 = vmatpush1.msra.mxu0 %v325
    %383 = vmatprep.subr.mxu0 0.0
    %384 = vmatpush1.msra.mxu0 %v326
    %385 = vmatprep.subr.mxu0 0.0
    %386 = vmatpush1.msra.mxu0 %v327
    %387 = vmatprep.subr.mxu0 0.0
    %388 = vmatpush1.msra.mxu0 %v328
    %389 = vmatprep.subr.mxu0 0.0
    %390 = vmatpush1.msra.mxu0 %v329
    %391 = vmatprep.subr.mxu0 0.0
    %392 = vmatpush1.msra.mxu0 %v330
    %393 = vmatprep.subr.mxu0 0.0
    %394 = vmatpush1.msra.mxu0 %v331
    %395 = vmatprep.subr.mxu0 0.0
    %396 = vmatpush1.msra.mxu0 %v332
    %397 = vmatprep.subr.mxu0 0.0
    %398 = vmatpush1.msra.mxu0 %v333
    %399 = vmatprep.subr.mxu0 0.0
    %400 = vmatpush1.msra.mxu0 %v334
    %401 = vmatprep.subr.mxu0 0.0
    %402 = vmatpush1.msra.mxu0 %v335
    %403 = vmatprep.subr.mxu0 0.0
    %404 = vmatpush1.msra.mxu0 %v336
    %405 = vmatprep.subr.mxu0 0.0
    %406 = vmatpush1.msra.mxu0 %v337
    %407 = vmatprep.subr.mxu0 0.0
    %408 = vmatpush1.msra.mxu0 %v338
    %409 = vmatprep.subr.mxu0 0.0
    %410 = vmatpush1.msra.mxu0 %v339
    %411 = vmatprep.mubr.f32.mxu0 %v305
    %412 = vmatmul.mubr.f32.gmra.mrb[0].mxu0 %v304
    %v413 = vpop.f32.mrb[0].mxu0
    %v414 = vadd.f32 %v345, %v413
    %v415 = vpop.f32.mrb[0].mxu0
    %416 = vmatprep.mubr.f32.mxu0 %v307
    %417 = vmatmul.mubr.f32.gmra.mrb[0].mxu0 %v306
    %v418 = vpop.f32.mrb[0].mxu0
    %v419 = vadd.f32 %v345, %v418
    %v420 = vpop.f32.mrb[0].mxu0
    %421 = vdwg.mxu0
    %422 = vst [vmem:[#allocation10] sm:$0xff] %v414
    %423 = vst [vmem:[#allocation10 + $0x8] sm:$0xff] %v419
    // Predicated region
    $region46: #{tpu_custom_call.1} parent=1 // pred_check
      _
    $region47: #{tpu_custom_call.1} parent=1 // pred_check_branch
      %425 = sbr.rel (0) target = $region49
    $region48: #{tpu_custom_call.1} parent=1 // pred_region
      %s427 = ssub.s32 256, 256
      %428 = vsyncadd [#allocation4], %s427
      %s429 = sshll.u32 [#allocation10], 4
      %s430 = int_to_ptr.vmem [resolvable:$true] %s429
      %435 = dma.vmem_to_hbm [thread:$0]  %s430, 256, %s7, [#allocation4], 128, 128, 8
    $region49: #{tpu_custom_call.1} parent=1 // pred_fallthru
      _
    // Predicated region
    $region50: #{tpu_custom_call.1} parent=1 // pred_check
      _
    $region51: #{tpu_custom_call.1} parent=1 // pred_check_branch
      %437 = sbr.rel (0) target = $region53
    $region52: #{tpu_custom_call.1} parent=1 // pred_region
      %438 = dma.done [#allocation4], 256
    $region53: #{tpu_custom_call.1} parent=1 // pred_fallthru
      _
    %439 = vsyncpa [#allocation3], 1
    %440 = vsyncpa [#allocation6], 1
    %441 = vsyncpa [#allocation9], 1
    %442 = vsyncpa [#allocation4], 1

</llo_original>
